<compile_context>
chip_gen: v7x
topology: tpu7x:2x2x1
jax: 0.10.0
libtpu: 0.0.40
codegen_flags: <defaults>
</compile_context>

<pallas_src>
import jax
import jax.numpy as jnp
from jax.experimental import pallas as pl
from jax.experimental.pallas import tpu as pltpu

_LANE = 128                       # lane width (fast axis)
_VMEM_LIMIT = 32 * 1024 * 1024    # explicit scoped-VMEM limit, safe on v5e/v6e/v7x


def _round_up(x, m):
    return ((x + m - 1) // m) * m


def gated_fusion_kernel(x_ref, w1_ref, b1_ref, w2_ref, b2_ref, o_ref):
    # x tile in its native dtype; bf16/f32 feeds the MXU directly.
    x = x_ref[...]                                                   # (tm, D)

    # hidden = ReLU(x @ W1 + b1), f32 accumulation on the MXU.
    h = jnp.dot(x, w1_ref[...], preferred_element_type=jnp.float32)
    h = jnp.maximum(h + b1_ref[...].astype(jnp.float32), 0.0)        # (tm, G)

    # gate = Sigmoid(h @ W2 + b2); cast h back to the weight dtype for the MXU.
    h = h.astype(w2_ref.dtype)
    g = jnp.dot(h, w2_ref[...], preferred_element_type=jnp.float32)
    gate = jax.nn.sigmoid(g + b2_ref[...].astype(jnp.float32))       # (tm, D)

    # out = x * gate (tail math in f32, store in the output dtype).
    o_ref[...] = (x.astype(jnp.float32) * gate).astype(o_ref.dtype)


def gated_fusion(x, w1, b1, w2, b2, *, tm=None,
                 vmem_target_bytes=16 * 1024 * 1024):
    """x: (..., D). w1: (D, G), b1: (G,), w2: (G, D), b2: (D,)."""
    orig_shape = x.shape
    D = orig_shape[-1]
    G = w1.shape[1]
    x2 = x.reshape(-1, D)
    M = x2.shape[0]

    itemsize = jnp.dtype(x.dtype).itemsize
    # Sublane multiple: 8 for f32, 16 for bf16, 32 for int8 (packing rule).
    sublane = 8 * max(1, 4 // max(itemsize, 1))

    # Biases as (1, dim) rows so they broadcast over the row tile in-kernel.
    b1r = b1.reshape(1, G)
    b2r = b2.reshape(1, D)

    # Vreg-layout-padded dims used ONLY for the VMEM budget arithmetic; the
    # arrays themselves are never padded (no extra HBM passes).
    Dp = _round_up(D, _LANE)
    Gp = _round_up(G, _LANE)

    # --- row-tile selection -------------------------------------------------
    if tm is None:
        w_itemsize = jnp.dtype(w1.dtype).itemsize
        # Weights + biases are grid-invariant but BlockSpec still allocates
        # double buffers for them.
        w_bytes = 2 * (Dp * Gp + Gp * Dp + Gp + Dp) * w_itemsize
        # Per-row cost: double-buffered x + out DMA tiles, plus the f32
        # intermediates (h, gate, x_f32) held during compute.
        per_row = 2 * 2 * Dp * itemsize + (Gp + 2 * Dp) * 4
        budget = max(vmem_target_bytes - w_bytes, sublane * per_row)
        tm = min(1024, budget // per_row)
    # Never tile past the (sublane-rounded) problem size.
    tm = min(tm, _round_up(max(M, 1), sublane))
    tm = max(sublane, (tm // sublane) * sublane)

    # Ragged last tile handled by Pallas: OOB input rows are undefined but the
    # math is per-row, and OOB output rows are dropped on writeback.
    grid = (pl.cdiv(M, tm),)

    out = pl.pallas_call(
        gated_fusion_kernel,
        out_shape=jax.ShapeDtypeStruct((M, D), x.dtype),
        grid_spec=pltpu.PrefetchScalarGridSpec(
            num_scalar_prefetch=0,
            grid=grid,
            in_specs=[
                pl.BlockSpec((tm, D), lambda i: (i, 0)),   # x tile (streamed)
                pl.BlockSpec((D, G), lambda i: (0, 0)),    # W1 (resident)
                pl.BlockSpec((1, G), lambda i: (0, 0)),    # b1 (resident)
                pl.BlockSpec((G, D), lambda i: (0, 0)),    # W2 (resident)
                pl.BlockSpec((1, D), lambda i: (0, 0)),    # b2 (resident)
            ],
            out_specs=pl.BlockSpec((tm, D), lambda i: (i, 0)),
        ),
        compiler_params=pltpu.CompilerParams(
            dimension_semantics=("parallel",),   # megacore-shardable row axis
            vmem_limit_bytes=_VMEM_LIMIT,
        ),
    )(x2, w1, b1r, w2, b2r)

    return out.reshape(orig_shape)


def reference(x, w1, b1, w2, b2):
    h = jnp.maximum(x @ w1 + b1, 0.0)
    gate = jax.nn.sigmoid(h @ w2 + b2)
    return x * gate


if __name__ == "__main__":
    key = jax.random.PRNGKey(0)
    batch, seq, input_dim, gating_dim = 2, 8, 32, 16

    k_x, k_w1, k_b1, k_w2, k_b2 = jax.random.split(key, 5)
    x = jax.random.normal(k_x, (batch, seq, input_dim), dtype=jnp.float32)

    # Deterministic parameter init (mimics nn.Linear uniform init scale).
    lim1 = 1.0 / (input_dim ** 0.5)
    lim2 = 1.0 / (gating_dim ** 0.5)
    w1 = jax.random.uniform(k_w1, (input_dim, gating_dim), jnp.float32, -lim1, lim1)
    b1 = jax.random.uniform(k_b1, (gating_dim,), jnp.float32, -lim1, lim1)
    w2 = jax.random.uniform(k_w2, (gating_dim, input_dim), jnp.float32, -lim2, lim2)
    b2 = jax.random.uniform(k_b2, (input_dim,), jnp.float32, -lim2, lim2)

    out = gated_fusion(x, w1, b1, w2, b2)
    out = jax.block_until_ready(out)

    ref = reference(x, w1, b1, w2, b2)
    assert out.shape == x.shape
    assert jnp.allclose(out, ref, atol=1e-5, rtol=1e-5), "mismatch vs reference"

    print("KERNEL_OK")
</pallas_src>

<mosaic_0001>
module attributes {stable_mosaic.version = 11 : i64} {
  func.func @gated_fusion_kernel(%arg0: i32, %arg1: memref<16x32xf32, #tpu.memory_space<vmem>>, %arg2: memref<32x16xf32, #tpu.memory_space<vmem>>, %arg3: memref<1x16xf32, #tpu.memory_space<vmem>>, %arg4: memref<16x32xf32, #tpu.memory_space<vmem>>, %arg5: memref<1x32xf32, #tpu.memory_space<vmem>>, %arg6: memref<16x32xf32, #tpu.memory_space<vmem>>) attributes {dimension_semantics = [#tpu.dimension_semantics<parallel>], iteration_bounds = array<i64: 1>, scalar_prefetch = 0 : i64, scratch_operands = 0 : i64, tpu.core_type = #tpu.core_type<tc>, window_params = [{transform_indices = @transform_0, window_bounds = array<i64: 16, 32>}, {pipeline_mode = #tpu.pipeline_mode<synchronous>, transform_indices = @transform_1, window_bounds = array<i64: 32, 16>}, {pipeline_mode = #tpu.pipeline_mode<synchronous>, transform_indices = @transform_2, window_bounds = array<i64: 1, 16>}, {pipeline_mode = #tpu.pipeline_mode<synchronous>, transform_indices = @transform_3, window_bounds = array<i64: 16, 32>}, {pipeline_mode = #tpu.pipeline_mode<synchronous>, transform_indices = @transform_4, window_bounds = array<i64: 1, 32>}, {transform_indices = @transform_5, window_bounds = array<i64: 16, 32>}]} {
    %c0 = arith.constant 0 : index
    %c0_0 = arith.constant 0 : index
    %0 = vector.load %arg1[%c0, %c0_0] : memref<16x32xf32, #tpu.memory_space<vmem>>, vector<16x32xf32>
    %c0_1 = arith.constant 0 : index
    %c0_2 = arith.constant 0 : index
    %1 = vector.load %arg2[%c0_1, %c0_2] : memref<32x16xf32, #tpu.memory_space<vmem>>, vector<32x16xf32>
    %cst = arith.constant dense<0.000000e+00> : vector<16x16xf32>
    %2 = tpu.matmul %0, %1, %cst {dimension_numbers = #tpu.dot_dimension_numbers<[1], [0], [0], [1], [0, 0, 1, 1], [], []>} : vector<16x32xf32>, vector<32x16xf32>, vector<16x16xf32> -> vector<16x16xf32>
    %c0_3 = arith.constant 0 : index
    %c0_4 = arith.constant 0 : index
    %3 = vector.load %arg3[%c0_3, %c0_4] : memref<1x16xf32, #tpu.memory_space<vmem>>, vector<1x16xf32>
    %4 = vector.broadcast %3 : vector<1x16xf32> to vector<16x16xf32>
    %5 = arith.addf %2, %4 : vector<16x16xf32>
    %cst_5 = arith.constant 0.000000e+00 : f32
    %6 = vector.broadcast %cst_5 : f32 to vector<16x16xf32>
    %7 = arith.maximumf %5, %6 : vector<16x16xf32>
    %c0_6 = arith.constant 0 : index
    %c0_7 = arith.constant 0 : index
    %8 = vector.load %arg4[%c0_6, %c0_7] : memref<16x32xf32, #tpu.memory_space<vmem>>, vector<16x32xf32>
    %cst_8 = arith.constant dense<0.000000e+00> : vector<16x32xf32>
    %9 = tpu.matmul %7, %8, %cst_8 {dimension_numbers = #tpu.dot_dimension_numbers<[1], [0], [0], [1], [0, 0, 1, 1], [], []>} : vector<16x16xf32>, vector<16x32xf32>, vector<16x32xf32> -> vector<16x32xf32>
    %c0_9 = arith.constant 0 : index
    %c0_10 = arith.constant 0 : index
    %10 = vector.load %arg5[%c0_9, %c0_10] : memref<1x32xf32, #tpu.memory_space<vmem>>, vector<1x32xf32>
    %11 = vector.broadcast %10 : vector<1x32xf32> to vector<16x32xf32>
    %12 = arith.addf %9, %11 : vector<16x32xf32>
    %13 = arith.negf %12 : vector<16x32xf32>
    %14 = math.exp %13 : vector<16x32xf32>
    %cst_11 = arith.constant 1.000000e+00 : f32
    %15 = vector.broadcast %cst_11 : f32 to vector<16x32xf32>
    %16 = arith.addf %15, %14 : vector<16x32xf32>
    %17 = arith.divf %15, %16 : vector<16x32xf32>
    %18 = arith.mulf %0, %17 : vector<16x32xf32>
    %c0_12 = arith.constant 0 : index
    %c0_13 = arith.constant 0 : index
    %19 = vector.load %arg6[%c0_12, %c0_13] : memref<16x32xf32, #tpu.memory_space<vmem>>, vector<16x32xf32>
    tpu.vector_store %arg6[%c0_12, %c0_13], %18 {strides = array<i32>} : memref<16x32xf32, #tpu.memory_space<vmem>>, vector<16x32xf32>,
    return
  }
  func.func @transform_0(%arg0: i32) -> (i32, i32) {
    %c0_i32 = arith.constant 0 : i32
    %c0_i32_0 = arith.constant 0 : i32
    return %arg0, %c0_i32 : i32, i32
  }
  func.func @transform_1(%arg0: i32) -> (i32, i32) {
    %c0_i32 = arith.constant 0 : i32
    %c0_i32_0 = arith.constant 0 : i32
    %c0_i32_1 = arith.constant 0 : i32
    return %c0_i32, %c0_i32_0 : i32, i32
  }
  func.func @transform_2(%arg0: i32) -> (i32, i32) {
    %c0_i32 = arith.constant 0 : i32
    %c0_i32_0 = arith.constant 0 : i32
    %c0_i32_1 = arith.constant 0 : i32
    return %c0_i32, %c0_i32_0 : i32, i32
  }
  func.func @transform_3(%arg0: i32) -> (i32, i32) {
    %c0_i32 = arith.constant 0 : i32
    %c0_i32_0 = arith.constant 0 : i32
    %c0_i32_1 = arith.constant 0 : i32
    return %c0_i32, %c0_i32_0 : i32, i32
  }
  func.func @transform_4(%arg0: i32) -> (i32, i32) {
    %c0_i32 = arith.constant 0 : i32
    %c0_i32_0 = arith.constant 0 : i32
    %c0_i32_1 = arith.constant 0 : i32
    return %c0_i32, %c0_i32_0 : i32, i32
  }
  func.func @transform_5(%arg0: i32) -> (i32, i32) {
    %c0_i32 = arith.constant 0 : i32
    %c0_i32_0 = arith.constant 0 : i32
    return %arg0, %c0_i32 : i32, i32
  }
}

</mosaic_0001>

<llo_original>
// kernel: tpu_custom_call.1
$region0: #{tpu_custom_call.1}
  #allocation0 [shape = 'u32[]', space=smem, size = 0x4, offset = 0x4, fixed_abs, tag = 'smem constant byte address 0x4 - core index']
  #allocation1 [shape = 'u32[144,128]{1,0:T(1,128)}', space=vmem, size = 0x12000, scoped, tag = 'internal scratch']
  %s0 = inlined_call_operand.vmem [shape: f32[16,32], index: 0, kind: input, shape index: {}]
  %s1 = inlined_call_operand.vmem [shape: f32[32,16], index: 1, kind: input, shape index: {}]
  %s2 = inlined_call_operand.vmem [shape: f32[1,16], index: 2, kind: input, shape index: {}]
  %s3 = inlined_call_operand.vmem [shape: f32[16,32], index: 3, kind: input, shape index: {}]
  %s4 = inlined_call_operand.vmem [shape: f32[1,32], index: 4, kind: input, shape index: {}]
  %s5 = inlined_call_operand.hbm [shape: f32[16,32], index: 5, kind: output, shape index: {}]
  %s6 = sld [smem:[#allocation0]]
  $region30: #{tpu_custom_call.1} parent=0
    _
  %s8 = ssub.s32 1, %s6
  %s9 = scalar_select 0, %s8, %s6
  $region1: #{tpu_custom_call.1} parent=0
    #allocation2 [shape = 'u8[8192]{0}', space=vmem, size = 0x2000, scoped, tag = 'output window, operand 0, single buffered']
    #allocation3 [shape = 's32[1]{0}', space=sflag, size = 0x4, scoped, tag = 'scoped memory for tpu_custom_call.1']
    %10 = vsyncpa [#allocation3], 0
    // Predicated region
    $region2: #{tpu_custom_call.1} parent=1 // pred_check
      _
    $region3: #{tpu_custom_call.1} parent=1 // pred_check_branch
      %12 = sbr.rel (0) target = $region5
    $region4: #{tpu_custom_call.1} parent=1 // pred_region
      _
    $region5: #{tpu_custom_call.1} parent=1 // pred_fallthru
      _
    // Predicated region
    $region6: #{tpu_custom_call.1} parent=1 // pred_check
      _
    $region7: #{tpu_custom_call.1} parent=1 // pred_check_branch
      %14 = sbr.rel (0) target = $region9
    $region8: #{tpu_custom_call.1} parent=1 // pred_region
      _
    $region9: #{tpu_custom_call.1} parent=1 // pred_fallthru
      _
    // Predicated region
    $region10: #{tpu_custom_call.1} parent=1 // pred_check
      _
    $region11: #{tpu_custom_call.1} parent=1 // pred_check_branch
      %16 = sbr.rel (0) target = $region13
    $region12: #{tpu_custom_call.1} parent=1 // pred_region
      _
    $region13: #{tpu_custom_call.1} parent=1 // pred_fallthru
      _
    // Predicated region
    $region14: #{tpu_custom_call.1} parent=1 // pred_check
      _
    $region15: #{tpu_custom_call.1} parent=1 // pred_check_branch
      %18 = sbr.rel (0) target = $region17
    $region16: #{tpu_custom_call.1} parent=1 // pred_region
      _
    $region17: #{tpu_custom_call.1} parent=1 // pred_fallthru
      _
    // Predicated region
    $region18: #{tpu_custom_call.1} parent=1 // pred_check
      _
    $region19: #{tpu_custom_call.1} parent=1 // pred_check_branch
      %20 = sbr.rel (0) target = $region21
    $region20: #{tpu_custom_call.1} parent=1 // pred_region
      _
    $region21: #{tpu_custom_call.1} parent=1 // pred_fallthru
      _
    %v21 = vld [vmem:[%s0] sm:$0xff]
    %v22 = vld [vmem:[%s0 + $0x8] sm:$0xff]
    %v23 = vld [vmem:[%s1] sm:$0xff]
    %v24 = vld [vmem:[%s1 + $0x8] sm:$0xff]
    %v25 = vld [vmem:[%s1 + $0x10] sm:$0xff]
    %v26 = vld [vmem:[%s1 + $0x18] sm:$0xff]
    %v27 = vld [vmem:[%s2] sm:$0x1]
    %v29 = vlaneseq
    %v30 = vshrl.u32 %v29, 7
    %v31 = vsub.s32 0, %v30
    %v32 = vrot.slane %v27, %v31
    %vm34 = vcmask 261120
    %v36 = vsel %vm34, %v21, 0
    %v39 = vsel %vm34, %v22, 0
    %41 = vmatprep.subr.mxu0 0.0
    %42 = vmatpush1.msra.mxu0 %v23
    %43 = vmatprep.subr.mxu0 0.0
    %44 = vmatpush1.msra.mxu0 %v24
    %45 = vmatprep.subr.mxu0 0.0
    %46 = vmatpush1.msra.mxu0 %v25
    %47 = vmatprep.subr.mxu0 0.0
    %48 = vmatpush1.msra.mxu0 %v26
    %49 = vmatprep.subr.mxu0 0.0
    %50 = vmatpush1.msra.mxu0 0.0
    %51 = vmatprep.subr.mxu0 0.0
    %52 = vmatpush1.msra.mxu0 0.0
    %53 = vmatprep.subr.mxu0 0.0
    %54 = vmatpush1.msra.mxu0 0.0
    %55 = vmatprep.subr.mxu0 0.0
    %56 = vmatpush1.msra.mxu0 0.0
    %57 = vmatprep.subr.mxu0 0.0
    %58 = vmatpush1.msra.mxu0 0.0
    %59 = vmatprep.subr.mxu0 0.0
    %60 = vmatpush1.msra.mxu0 0.0
    %61 = vmatprep.subr.mxu0 0.0
    %62 = vmatpush1.msra.mxu0 0.0
    %63 = vmatprep.subr.mxu0 0.0
    %64 = vmatpush1.msra.mxu0 0.0
    %65 = vmatprep.subr.mxu0 0.0
    %66 = vmatpush1.msra.mxu0 0.0
    %67 = vmatprep.subr.mxu0 0.0
    %68 = vmatpush1.msra.mxu0 0.0
    %69 = vmatprep.subr.mxu0 0.0
    %70 = vmatpush1.msra.mxu0 0.0
    %71 = vmatprep.subr.mxu0 0.0
    %72 = vmatpush1.msra.mxu0 0.0
    %73 = vmatprep.subr.mxu0 0.0
    %74 = vmatpush1.msra.mxu0 0.0
    %75 = vmatprep.subr.mxu0 0.0
    %76 = vmatpush1.msra.mxu0 0.0
    %77 = vmatprep.subr.mxu0 0.0
    %78 = vmatpush1.msra.mxu0 0.0
    %79 = vmatprep.subr.mxu0 0.0
    %80 = vmatpush1.msra.mxu0 0.0
    %81 = vmatprep.subr.mxu0 0.0
    %82 = vmatpush1.msra.mxu0 0.0
    %83 = vmatprep.subr.mxu0 0.0
    %84 = vmatpush1.msra.mxu0 0.0
    %85 = vmatprep.subr.mxu0 0.0
    %86 = vmatpush1.msra.mxu0 0.0
    %87 = vmatprep.subr.mxu0 0.0
    %88 = vmatpush1.msra.mxu0 0.0
    %89 = vmatprep.subr.mxu0 0.0
    %90 = vmatpush1.msra.mxu0 0.0
    %91 = vmatprep.subr.mxu0 0.0
    %92 = vmatpush1.msra.mxu0 0.0
    %93 = vmatprep.subr.mxu0 0.0
    %94 = vmatpush1.msra.mxu0 0.0
    %95 = vmatprep.subr.mxu0 0.0
    %96 = vmatpush1.msra.mxu0 0.0
    %97 = vmatprep.subr.mxu0 0.0
    %98 = vmatpush1.msra.mxu0 0.0
    %99 = vmatprep.subr.mxu0 0.0
    %100 = vmatpush1.msra.mxu0 0.0
    %101 = vmatprep.subr.mxu0 0.0
    %102 = vmatpush1.msra.mxu0 0.0
    %103 = vmatprep.subr.mxu0 0.0
    %104 = vmatpush1.msra.mxu0 0.0
    %105 = vmatprep.mubr.f32.mxu0 0.0
    %106 = vmatmul.mubr.f32.gmra.mrb[0].mxu0 %v36
    %v107 = vpop.f32.mrb[0].mxu0
    %v108 = vadd.f32 %v32, %v107
    %v109 = vpop.f32.mrb[0].mxu0
    %110 = vmatprep.mubr.f32.mxu0 0.0
    %111 = vmatmul.mubr.f32.gmra.mrb[0].mxu0 %v39
    %v112 = vpop.f32.mrb[0].mxu0
    %v113 = vadd.f32 %v32, %v112
    %v114 = vpop.f32.mrb[0].mxu0
    %115 = vdwg.mxu0
    %v116 = vmax.f32 %v108, 0.0
    %v117 = vmax.f32 %v113, 0.0
    %v118 = vld [vmem:[%s3] sm:$0xff]
    %v119 = vld [vmem:[%s3 + $0x8] sm:$0xff]
    %v120 = vld [vmem:[%s4] sm:$0x1]
    %v122 = vlaneseq
    %v123 = vshrl.u32 %v122, 7
    %v124 = vsub.s32 0, %v123
    %v125 = vrot.slane %v120, %v124
    %vm127 = vcmask 130048
    %v129 = vsel %vm127, %v116, 0
    %v132 = vsel %vm127, %v117, 0
    %134 = vmatprep.subr.mxu0 0.0
    %135 = vmatpush1.msra.mxu0 %v118
    %136 = vmatprep.subr.mxu0 0.0
    %137 = vmatpush1.msra.mxu0 %v119
    %138 = vmatprep.subr.mxu0 0.0
    %139 = vmatpush1.msra.mxu0 0.0
    %140 = vmatprep.subr.mxu0 0.0
    %141 = vmatpush1.msra.mxu0 0.0
    %142 = vmatprep.subr.mxu0 0.0
    %143 = vmatpush1.msra.mxu0 0.0
    %144 = vmatprep.subr.mxu0 0.0
    %145 = vmatpush1.msra.mxu0 0.0
    %146 = vmatprep.subr.mxu0 0.0
    %147 = vmatpush1.msra.mxu0 0.0
    %148 = vmatprep.subr.mxu0 0.0
    %149 = vmatpush1.msra.mxu0 0.0
    %150 = vmatprep.subr.mxu0 0.0
    %151 = vmatpush1.msra.mxu0 0.0
    %152 = vmatprep.subr.mxu0 0.0
    %153 = vmatpush1.msra.mxu0 0.0
    %154 = vmatprep.subr.mxu0 0.0
    %155 = vmatpush1.msra.mxu0 0.0
    %156 = vmatprep.subr.mxu0 0.0
    %157 = vmatpush1.msra.mxu0 0.0
    %158 = vmatprep.subr.mxu0 0.0
    %159 = vmatpush1.msra.mxu0 0.0
    %160 = vmatprep.subr.mxu0 0.0
    %161 = vmatpush1.msra.mxu0 0.0
    %162 = vmatprep.subr.mxu0 0.0
    %163 = vmatpush1.msra.mxu0 0.0
    %164 = vmatprep.subr.mxu0 0.0
    %165 = vmatpush1.msra.mxu0 0.0
    %166 = vmatprep.subr.mxu0 0.0
    %167 = vmatpush1.msra.mxu0 0.0
    %168 = vmatprep.subr.mxu0 0.0
    %169 = vmatpush1.msra.mxu0 0.0
    %170 = vmatprep.subr.mxu0 0.0
    %171 = vmatpush1.msra.mxu0 0.0
    %172 = vmatprep.subr.mxu0 0.0
    %173 = vmatpush1.msra.mxu0 0.0
    %174 = vmatprep.subr.mxu0 0.0
    %175 = vmatpush1.msra.mxu0 0.0
    %176 = vmatprep.subr.mxu0 0.0
    %177 = vmatpush1.msra.mxu0 0.0
    %178 = vmatprep.subr.mxu0 0.0
    %179 = vmatpush1.msra.mxu0 0.0
    %180 = vmatprep.subr.mxu0 0.0
    %181 = vmatpush1.msra.mxu0 0.0
    %182 = vmatprep.subr.mxu0 0.0
    %183 = vmatpush1.msra.mxu0 0.0
    %184 = vmatprep.subr.mxu0 0.0
    %185 = vmatpush1.msra.mxu0 0.0
    %186 = vmatprep.subr.mxu0 0.0
    %187 = vmatpush1.msra.mxu0 0.0
    %188 = vmatprep.subr.mxu0 0.0
    %189 = vmatpush1.msra.mxu0 0.0
    %190 = vmatprep.subr.mxu0 0.0
    %191 = vmatpush1.msra.mxu0 0.0
    %192 = vmatprep.subr.mxu0 0.0
    %193 = vmatpush1.msra.mxu0 0.0
    %194 = vmatprep.subr.mxu0 0.0
    %195 = vmatpush1.msra.mxu0 0.0
    %196 = vmatprep.subr.mxu0 0.0
    %197 = vmatpush1.msra.mxu0 0.0
    %198 = vmatprep.mubr.f32.mxu0 0.0
    %199 = vmatmul.mubr.f32.gmra.mrb[0].mxu0 %v129
    %v200 = vpop.f32.mrb[0].mxu0
    %v201 = vadd.f32 %v125, %v200
    %v202 = vpop.f32.mrb[0].mxu0
    %203 = vmatprep.mubr.f32.mxu0 0.0
    %204 = vmatmul.mubr.f32.gmra.mrb[0].mxu0 %v132
    %v205 = vpop.f32.mrb[0].mxu0
    %v206 = vadd.f32 %v125, %v205
    %v207 = vpop.f32.mrb[0].mxu0
    %208 = vdwg.mxu0
    %v209 = vxor.u32 %v201, 2147483648
    %v210 = vxor.u32 %v206, 2147483648
    %v211 = vmul.f32 %v209, 1.442695
    %v212 = vpow.pop %v211
    %v213 = vmul.f32 %v210, 1.442695
    %v214 = vpow.pop %v213
    %v215 = vadd.f32 %v212, 1.0
    %v216 = vadd.f32 %v214, 1.0
    %v217 = vrcp.pop %v215
    %v218 = vmul.f32 1.0, %v217
    %v219 = vrcp.pop %v216
    %v220 = vmul.f32 1.0, %v219
    %v221 = vmul.f32 %v21, %v218
    %v222 = vmul.f32 %v22, %v220
    %223 = vst.msk [vmem:[#allocation2] sm:$0xff] %vm34, %v221
    %224 = vst.msk [vmem:[#allocation2 + $0x8] sm:$0xff] %vm34, %v222
    // Predicated region
    $region22: #{tpu_custom_call.1} parent=1 // pred_check
      _
    $region23: #{tpu_custom_call.1} parent=1 // pred_check_branch
      %226 = sbr.rel (0) target = $region25
    $region24: #{tpu_custom_call.1} parent=1 // pred_region
      %s228 = ssub.s32 256, 256
      %229 = vsyncadd [#allocation3], %s228
      %s230 = sshll.u32 [#allocation2], 4
      %s231 = int_to_ptr.vmem [resolvable:$true] %s230
      %236 = dma.vmem_to_hbm [thread:$0]  %s231, 256, %s5, [#allocation3], 128, 128, 8
    $region25: #{tpu_custom_call.1} parent=1 // pred_fallthru
      _
    // Predicated region
    $region26: #{tpu_custom_call.1} parent=1 // pred_check
      _
    $region27: #{tpu_custom_call.1} parent=1 // pred_check_branch
      %238 = sbr.rel (0) target = $region29
    $region28: #{tpu_custom_call.1} parent=1 // pred_region
      %239 = dma.done [#allocation3], 256
    $region29: #{tpu_custom_call.1} parent=1 // pred_fallthru
      _
    %240 = vsyncpa [#allocation3], 1

</llo_original>
